<compile_context>
chip_gen: v7x
topology: tpu7x:2x2x1
jax: 0.10.0
libtpu: 0.0.40
codegen_flags: <defaults>
</compile_context>

<pallas_src>
import numpy as np
import jax
import jax.numpy as jnp
from jax import lax
from jax.experimental import pallas as pl
from jax.experimental.pallas import tpu as pltpu

# Mirrors Config['variance'] in the SSD codebase.
VARIANCE = (0.1, 0.2)
_LANE = 128


def _pick_tile(pp, candidates):
    for t in candidates:
        if pp % t == 0:
            return t
    return pp


# ---------------------------------------------------------------------------
# Kernel 1: per-prior statistics (lane-dense, single LSE pass).
#   grid = (B, P-tiles), both axes "parallel".
# ---------------------------------------------------------------------------
def _stats_kernel(valid_ref, locd_ref, loct_ref, confd_ref, conft_ref,
                  lrank_ref, ce_ref, posf_ref, sl1_ref):
    valid = valid_ref[0]                          # (1, TP) f32
    conf_t = conft_ref[0]                         # (1, TP) i32
    pos = (conf_t > 0) & (valid > 0.5)            # (1, TP) bool
    posf = jnp.where(pos, 1.0, 0.0)

    # Smooth-L1 over the 4 box coords (sublane axis), masked by pos.
    diff = locd_ref[0] - loct_ref[0]              # (4, TP)
    ad = jnp.abs(diff)
    sl1 = jnp.where(ad < 1.0, 0.5 * diff * diff, ad - 0.5)
    sl1_sum = jnp.sum(sl1, axis=0, keepdims=True)  # (1, TP)
    sl1_ref[0] = posf * sl1_sum
    posf_ref[0] = posf

    # Per-prior log-sum-exp over the classes: one exp sweep, per-row max
    # (numerically safe), reused for the ranking value AND the cross entropy.
    conf = confd_ref[0]                           # (C, TP)
    cmax = jnp.max(conf, axis=0, keepdims=True)   # (1, TP)
    lse = jnp.log(jnp.sum(jnp.exp(conf - cmax), axis=0, keepdims=True)) + cmax
    cls_iota = lax.broadcasted_iota(jnp.int32, conf.shape, 0)
    gathered = jnp.sum(jnp.where(cls_iota == conf_t, conf, 0.0),
                       axis=0, keepdims=True)     # (1, TP)
    ce = lse - gathered                           # (1, TP), >= 0
    ce_ref[0] = ce
    # Ranking value: 0 on positives (reference zeroes them before sorting),
    # very negative on padded priors so they never rank as hard negatives.
    lrank_ref[0] = jnp.where(valid > 0.5, jnp.where(pos, 0.0, ce), -1e30)


# ---------------------------------------------------------------------------
# Kernel 2: hard-negative mining without the (B, P, P) tensor.
#   grid = (B, i-tiles, j-tiles), ("parallel", "parallel", "arbitrary").
#   cnt[i] = #{ j : lrank[j] > lrank[i] } accumulated across j-tiles in a
#   (1, TI) f32 VMEM scratch; finalize selects pos | (cnt < num_neg[b]).
# ---------------------------------------------------------------------------
def _mining_kernel(numneg_ref,                        # SMEM prefetch, (B,) i32
                   lrank_i_ref, lrank_j_ref, ce_ref, posf_ref, valid_ref,
                   out_ref, cnt_ref):
    b = pl.program_id(0)
    j = pl.program_id(2)

    @pl.when(j == 0)
    def _init():
        cnt_ref[...] = jnp.zeros_like(cnt_ref)

    li = lrank_i_ref[0]                               # (1, TI)  i on lanes
    lj = lrank_j_ref[0]                               # (TJ, 1)  j on sublanes
    gt = jnp.where(lj > li, 1.0, 0.0)                 # (TJ, TI) tile only
    cnt_ref[...] += jnp.sum(gt, axis=0, keepdims=True)    # (1, TI) sublane reduce

    @pl.when(j == pl.num_programs(2) - 1)
    def _finalize():
        kneg = numneg_ref[b].astype(jnp.float32)
        neg = cnt_ref[...] < kneg                     # (1, TI)
        pos = posf_ref[0] > 0.5
        sel = (pos | neg) & (valid_ref[0] > 0.5)
        out_ref[0] = jnp.where(sel, ce_ref[0], 0.0)


# ---------------------------------------------------------------------------
# Wrapper: layout plumbing + the two pallas_calls.
# ---------------------------------------------------------------------------
def multibox_loss_pallas(loc_data, conf_data, loc_t, conf_t,
                         negpos_ratio=3, negatives_for_hard=100):
    B, P, _ = loc_data.shape
    C = conf_data.shape[-1]
    Pp = ((P + _LANE - 1) // _LANE) * _LANE
    pad = Pp - P

    def pad_last(x):
        if pad == 0:
            return x
        cfg = [(0, 0)] * (x.ndim - 1) + [(0, pad)]
        return jnp.pad(x, cfg)

    # Lane-dense layouts: priors on the lane axis.
    loc_d = pad_last(jnp.transpose(loc_data, (0, 2, 1)).astype(jnp.float32))
    loc_tt = pad_last(jnp.transpose(loc_t, (0, 2, 1)).astype(jnp.float32))
    conf_d = pad_last(jnp.transpose(conf_data, (0, 2, 1)).astype(jnp.float32))
    conf_tt = pad_last(conf_t.astype(jnp.int32)[:, None, :])        # (B,1,Pp)
    valid = (jnp.arange(Pp) < P).astype(jnp.float32)[None, None, :]  # (1,1,Pp)

    # ---- kernel 1: per-prior stats --------------------------------------
    TP = _pick_tile(Pp, (512, 256, 128))
    n_pt = Pp // TP
    row_spec = pl.BlockSpec((1, 1, TP), lambda b, t: (b, 0, t))
    lrank, ce, posf, sl1m = pl.pallas_call(
        _stats_kernel,
        out_shape=tuple(jax.ShapeDtypeStruct((B, 1, Pp), jnp.float32)
                        for _ in range(4)),
        grid=(B, n_pt),
        in_specs=[
            pl.BlockSpec((1, 1, TP), lambda b, t: (0, 0, t)),   # valid mask
            pl.BlockSpec((1, 4, TP), lambda b, t: (b, 0, t)),   # loc pred
            pl.BlockSpec((1, 4, TP), lambda b, t: (b, 0, t)),   # loc target
            pl.BlockSpec((1, C, TP), lambda b, t: (b, 0, t)),   # conf pred
            row_spec,                                           # conf target
        ],
        out_specs=(row_spec, row_spec, row_spec, row_spec),
        compiler_params=pltpu.CompilerParams(
            dimension_semantics=("parallel", "parallel"),
            vmem_limit_bytes=32 * 1024 * 1024),
    )(valid, loc_d, loc_tt, conf_d, conf_tt)

    # Cheap (B,)-sized / scalar reductions on the kernel outputs.
    num_pos_b = jnp.sum(posf, axis=(1, 2))                      # (B,) f32
    loss_l = jnp.sum(sl1m)
    num_pos_i = num_pos_b.astype(jnp.int32)
    num_neg = jnp.minimum(negpos_ratio * num_pos_i, P - 1)
    num_neg = jnp.where(num_neg == 0, jnp.int32(negatives_for_hard), num_neg)

    # ---- kernel 2: hard-negative mining + selected cross entropy --------
    TI = _pick_tile(Pp, (512, 256, 128))          # i on lanes (output tile)
    TJ = _pick_tile(Pp, (256, 128))               # j on sublanes
    n_it = Pp // TI
    n_jt = Pp // TJ
    lrank_col = lrank.reshape(B, Pp, 1)   # free reshape: j-tiles on sublanes
    itile = pl.BlockSpec((1, 1, TI), lambda b, i, j, nn: (b, 0, i))
    ce_sel = pl.pallas_call(
        _mining_kernel,
        out_shape=jax.ShapeDtypeStruct((B, 1, Pp), jnp.float32),
        grid_spec=pltpu.PrefetchScalarGridSpec(
            num_scalar_prefetch=1,
            grid=(B, n_it, n_jt),
            in_specs=[
                itile,                                                 # lrank i
                pl.BlockSpec((1, TJ, 1), lambda b, i, j, nn: (b, j, 0)),  # lrank j
                itile,                                                 # ce
                itile,                                                 # posf
                pl.BlockSpec((1, 1, TI), lambda b, i, j, nn: (0, 0, i)),  # valid
            ],
            out_specs=itile,
            scratch_shapes=[pltpu.VMEM((1, TI), jnp.float32)],
        ),
        compiler_params=pltpu.CompilerParams(
            dimension_semantics=("parallel", "parallel", "arbitrary"),
            vmem_limit_bytes=32 * 1024 * 1024),
    )(num_neg, lrank, lrank_col, ce, posf, valid)

    loss_c = jnp.sum(ce_sel)
    n = jnp.maximum(jnp.sum(num_pos_b), 1.0)
    return loss_l / n, loss_c / n


# ---------------------------------------------------------------------------
# Plain-JAX glue: SSD `match` / `encode` (target construction per image).
# ---------------------------------------------------------------------------
def _point_form(boxes):
    # (cx, cy, w, h) -> (xmin, ymin, xmax, ymax)
    return jnp.concatenate([boxes[:, :2] - boxes[:, 2:] / 2.0,
                            boxes[:, :2] + boxes[:, 2:] / 2.0], axis=1)


def _jaccard(box_a, box_b):
    max_xy = jnp.minimum(box_a[:, None, 2:], box_b[None, :, 2:])
    min_xy = jnp.maximum(box_a[:, None, :2], box_b[None, :, :2])
    wh = jnp.clip(max_xy - min_xy, 0.0, None)
    inter = wh[..., 0] * wh[..., 1]
    area_a = ((box_a[:, 2] - box_a[:, 0]) * (box_a[:, 3] - box_a[:, 1]))[:, None]
    area_b = ((box_b[:, 2] - box_b[:, 0]) * (box_b[:, 3] - box_b[:, 1]))[None, :]
    return inter / (area_a + area_b - inter)


def _match_one(truths, labels, priors, threshold, variances):
    # truths (T, 4) corner form, labels (T,), priors (P, 4) center form
    overlaps = _jaccard(truths, _point_form(priors))          # (T, P)
    best_prior_idx = jnp.argmax(overlaps, axis=1)              # (T,)
    best_truth_overlap = jnp.max(overlaps, axis=0)             # (P,)
    best_truth_idx = jnp.argmax(overlaps, axis=0)              # (P,)
    best_truth_overlap = best_truth_overlap.at[best_prior_idx].set(2.0)
    best_truth_idx = best_truth_idx.at[best_prior_idx].set(
        jnp.arange(truths.shape[0]))
    matches = truths[best_truth_idx]                           # (P, 4)
    conf = (labels[best_truth_idx] + 1.0).astype(jnp.int32)
    conf = jnp.where(best_truth_overlap < threshold, 0, conf)  # (P,)
    # encode
    g_cxcy = (matches[:, :2] + matches[:, 2:]) / 2.0 - priors[:, :2]
    g_cxcy = g_cxcy / (variances[0] * priors[:, 2:])
    g_wh = (matches[:, 2:] - matches[:, :2]) / priors[:, 2:]
    g_wh = jnp.log(g_wh) / variances[1]
    loc = jnp.concatenate([g_cxcy, g_wh], axis=1)              # (P, 4)
    return loc.astype(jnp.float32), conf


class MultiBoxLoss:
    """JAX/Pallas re-implementation of nets/ssd_training.py::MultiBoxLoss."""

    def __init__(self, num_classes, overlap_thresh, prior_for_matching,
                 bkg_label, neg_mining, neg_pos, neg_overlap, encode_target,
                 use_gpu=True, negatives_for_hard=100.0):
        self.num_classes = num_classes
        self.threshold = overlap_thresh
        self.background_label = bkg_label
        self.encode_target = encode_target
        self.use_prior_for_matching = prior_for_matching
        self.do_neg_mining = neg_mining
        self.negpos_ratio = neg_pos
        self.neg_overlap = neg_overlap
        self.negatives_for_hard = negatives_for_hard
        self.variance = VARIANCE

    def build_targets(self, priors, targets):
        # TODO(synk): the PyTorch loop skips images with zero GT boxes; this
        # glue assumes every image has >= 1 GT (fixed T per image) so it vmaps.
        return jax.vmap(
            lambda t: _match_one(t[:, :4], t[:, 4], priors,
                                 self.threshold, self.variance))(targets)

    def forward(self, predictions, targets):
        loc_data, conf_data, priors = predictions
        loc_t, conf_t = self.build_targets(priors, targets)
        return multibox_loss_pallas(loc_data, conf_data, loc_t, conf_t,
                                    self.negpos_ratio,
                                    int(self.negatives_for_hard))


# ---------------------------------------------------------------------------
# Pure-JAX reference (mirrors the PyTorch forward) for a correctness check.
# ---------------------------------------------------------------------------
def _reference_multibox_loss(loc_data, conf_data, loc_t, conf_t,
                             negpos_ratio, negatives_for_hard):
    B, P, _ = conf_data.shape
    pos = conf_t > 0
    diff = loc_data - loc_t
    ad = jnp.abs(diff)
    sl1 = jnp.where(ad < 1.0, 0.5 * diff * diff, ad - 0.5)
    loss_l = jnp.sum(jnp.where(pos[..., None], sl1, 0.0))
    lse = jax.scipy.special.logsumexp(conf_data, axis=-1)
    gathered = jnp.take_along_axis(conf_data, conf_t[..., None], axis=-1)[..., 0]
    ce = lse - gathered
    rank_val = jnp.where(pos, 0.0, ce)
    loss_idx = jnp.argsort(-rank_val, axis=1)        # descending
    idx_rank = jnp.argsort(loss_idx, axis=1)
    num_pos = jnp.sum(pos, axis=1)
    num_neg = jnp.minimum(negpos_ratio * num_pos, P - 1)
    num_neg = jnp.where(num_neg == 0, negatives_for_hard, num_neg)
    neg = idx_rank < num_neg[:, None]
    sel = pos | neg
    loss_c = jnp.sum(jnp.where(sel, ce, 0.0))
    n = jnp.maximum(jnp.sum(num_pos).astype(jnp.float32), 1.0)
    return loss_l / n, loss_c / n


# ---------------------------------------------------------------------------
# Demo
# ---------------------------------------------------------------------------
if __name__ == "__main__":
    B, P, C, T = 2, 32, 8, 3          # batch, priors, classes, GT boxes/img

    key = jax.random.PRNGKey(0)
    k1, k2, k3, k4, k5 = jax.random.split(key, 5)

    # Priors: 8x4 grid of 0.3x0.3 boxes (center form), deterministic.
    pidx = jnp.arange(P, dtype=jnp.float32)
    cx = (pidx % 8 + 0.5) / 8.0
    cy = (jnp.floor(pidx / 8) + 0.5) / 4.0
    priors = jnp.stack([cx, cy, jnp.full((P,), 0.3), jnp.full((P,), 0.3)],
                       axis=1).astype(jnp.float32)

    # Ground-truth targets: (B, T, 5) = (xmin, ymin, xmax, ymax, label)
    centers = jax.random.uniform(k1, (B, T, 2), minval=0.25, maxval=0.75)
    sizes = jax.random.uniform(k2, (B, T, 2), minval=0.15, maxval=0.35)
    boxes = jnp.concatenate([centers - sizes / 2.0, centers + sizes / 2.0],
                            axis=-1)
    labels = jax.random.randint(k3, (B, T), 0, C - 1).astype(jnp.float32)
    targets = jnp.concatenate([boxes, labels[..., None]],
                              axis=-1).astype(jnp.float32)

    # Network predictions.
    loc_data = (0.1 * jax.random.normal(k4, (B, P, 4))).astype(jnp.float32)
    conf_data = jax.random.normal(k5, (B, P, C)).astype(jnp.float32)

    criterion = MultiBoxLoss(num_classes=C, overlap_thresh=0.5,
                             prior_for_matching=True, bkg_label=0,
                             neg_mining=True, neg_pos=3, neg_overlap=0.5,
                             encode_target=False, use_gpu=False,
                             negatives_for_hard=100.0)

    loss_l, loss_c = criterion.forward((loc_data, conf_data, priors), targets)
    jax.block_until_ready((loss_l, loss_c))

    # Correctness check against the pure-JAX reference of the PyTorch forward.
    loc_t, conf_t = criterion.build_targets(priors, targets)
    ref_l, ref_c = _reference_multibox_loss(loc_data, conf_data, loc_t, conf_t,
                                            criterion.negpos_ratio,
                                            int(criterion.negatives_for_hard))
    assert np.allclose(np.asarray(loss_l), np.asarray(ref_l),
                       rtol=1e-3, atol=1e-3), (loss_l, ref_l)
    assert np.allclose(np.asarray(loss_c), np.asarray(ref_c),
                       rtol=1e-3, atol=1e-3), (loss_c, ref_c)

    print("KERNEL_OK")
</pallas_src>

<mosaic_0001>
module attributes {stable_mosaic.version = 11 : i64} {
  func.func @_stats_kernel(%arg0: i32, %arg1: i32, %arg2: memref<1x1x128xf32, #tpu.memory_space<vmem>>, %arg3: memref<1x4x128xf32, #tpu.memory_space<vmem>>, %arg4: memref<1x4x128xf32, #tpu.memory_space<vmem>>, %arg5: memref<1x8x128xf32, #tpu.memory_space<vmem>>, %arg6: memref<1x1x128xi32, #tpu.memory_space<vmem>>, %arg7: memref<1x1x128xf32, #tpu.memory_space<vmem>>, %arg8: memref<1x1x128xf32, #tpu.memory_space<vmem>>, %arg9: memref<1x1x128xf32, #tpu.memory_space<vmem>>, %arg10: memref<1x1x128xf32, #tpu.memory_space<vmem>>) attributes {dimension_semantics = [#tpu.dimension_semantics<parallel>, #tpu.dimension_semantics<parallel>], iteration_bounds = array<i64: 2, 1>, scalar_prefetch = 0 : i64, scratch_operands = 0 : i64, tpu.core_type = #tpu.core_type<tc>, window_params = [{transform_indices = @transform_0, window_bounds = array<i64: 1, 1, 128>}, {transform_indices = @transform_1, window_bounds = array<i64: 1, 4, 128>}, {transform_indices = @transform_2, window_bounds = array<i64: 1, 4, 128>}, {transform_indices = @transform_3, window_bounds = array<i64: 1, 8, 128>}, {transform_indices = @transform_4, window_bounds = array<i64: 1, 1, 128>}, {transform_indices = @transform_5, window_bounds = array<i64: 1, 1, 128>}, {transform_indices = @transform_6, window_bounds = array<i64: 1, 1, 128>}, {transform_indices = @transform_7, window_bounds = array<i64: 1, 1, 128>}, {transform_indices = @transform_8, window_bounds = array<i64: 1, 1, 128>}]} {
    %c0 = arith.constant 0 : index
    %c0_0 = arith.constant 0 : index
    %c0_1 = arith.constant 0 : index
    %0 = vector.load %arg2[%c0, %c0_0, %c0_1] : memref<1x1x128xf32, #tpu.memory_space<vmem>>, vector<1x1x128xf32>
    %1 = vector.shape_cast %0 : vector<1x1x128xf32> to vector<1x128xf32>
    %c0_2 = arith.constant 0 : index
    %c0_3 = arith.constant 0 : index
    %c0_4 = arith.constant 0 : index
    %2 = vector.load %arg6[%c0_2, %c0_3, %c0_4] : memref<1x1x128xi32, #tpu.memory_space<vmem>>, vector<1x1x128xi32>
    %3 = vector.shape_cast %2 : vector<1x1x128xi32> to vector<1x128xi32>
    %c0_i32 = arith.constant 0 : i32
    %4 = vector.broadcast %c0_i32 : i32 to vector<1x128xi32>
    %5 = arith.cmpi sgt, %3, %4 : vector<1x128xi32>
    %cst = arith.constant 5.000000e-01 : f32
    %6 = vector.broadcast %cst : f32 to vector<1x128xf32>
    %7 = arith.cmpf ogt, %1, %6 : vector<1x128xf32>
    %8 = arith.andi %5, %7 : vector<1x128xi1>
    %cst_5 = arith.constant 1.000000e+00 : f32
    %cst_6 = arith.constant 0.000000e+00 : f32
    %9 = vector.broadcast %cst_5 : f32 to vector<1x128xf32>
    %10 = vector.broadcast %cst_6 : f32 to vector<1x128xf32>
    %11 = arith.select %8, %9, %10 : vector<1x128xi1>, vector<1x128xf32>
    %c0_7 = arith.constant 0 : index
    %c0_8 = arith.constant 0 : index
    %c0_9 = arith.constant 0 : index
    %12 = vector.load %arg3[%c0_7, %c0_8, %c0_9] : memref<1x4x128xf32, #tpu.memory_space<vmem>>, vector<1x4x128xf32>
    %13 = vector.shape_cast %12 : vector<1x4x128xf32> to vector<4x128xf32>
    %c0_10 = arith.constant 0 : index
    %c0_11 = arith.constant 0 : index
    %c0_12 = arith.constant 0 : index
    %14 = vector.load %arg4[%c0_10, %c0_11, %c0_12] : memref<1x4x128xf32, #tpu.memory_space<vmem>>, vector<1x4x128xf32>
    %15 = vector.shape_cast %14 : vector<1x4x128xf32> to vector<4x128xf32>
    %16 = arith.subf %13, %15 : vector<4x128xf32>
    %17 = math.absf %16 : vector<4x128xf32>
    %cst_13 = arith.constant 1.000000e+00 : f32
    %18 = vector.broadcast %cst_13 : f32 to vector<4x128xf32>
    %19 = arith.cmpf olt, %17, %18 : vector<4x128xf32>
    %cst_14 = arith.constant 5.000000e-01 : f32
    %20 = vector.broadcast %cst_14 : f32 to vector<4x128xf32>
    %21 = arith.mulf %20, %16 : vector<4x128xf32>
    %22 = arith.mulf %21, %16 : vector<4x128xf32>
    %cst_15 = arith.constant 5.000000e-01 : f32
    %23 = vector.broadcast %cst_15 : f32 to vector<4x128xf32>
    %24 = arith.subf %17, %23 : vector<4x128xf32>
    %25 = arith.select %19, %22, %24 : vector<4x128xi1>, vector<4x128xf32>
    %cst_16 = arith.constant dense<0.000000e+00> : vector<128xf32>
    %26 = vector.multi_reduction <add>, %25, %cst_16 [0] : vector<4x128xf32> to vector<128xf32>
    %27 = vector.shape_cast %26 : vector<128xf32> to vector<1x128xf32>
    %28 = arith.mulf %11, %27 : vector<1x128xf32>
    %c0_17 = arith.constant 0 : index
    %c0_18 = arith.constant 0 : index
    %c0_19 = arith.constant 0 : index
    %29 = vector.load %arg10[%c0_17, %c0_18, %c0_19] : memref<1x1x128xf32, #tpu.memory_space<vmem>>, vector<1x1x128xf32>
    %30 = vector.shape_cast %29 : vector<1x1x128xf32> to vector<1x128xf32>
    %31 = vector.shape_cast %28 : vector<1x128xf32> to vector<1x1x128xf32>
    tpu.vector_store %arg10[%c0_17, %c0_18, %c0_19], %31 {strides = array<i32>} : memref<1x1x128xf32, #tpu.memory_space<vmem>>, vector<1x1x128xf32>,
    %c0_20 = arith.constant 0 : index
    %c0_21 = arith.constant 0 : index
    %c0_22 = arith.constant 0 : index
    %32 = vector.load %arg9[%c0_20, %c0_21, %c0_22] : memref<1x1x128xf32, #tpu.memory_space<vmem>>, vector<1x1x128xf32>
    %33 = vector.shape_cast %32 : vector<1x1x128xf32> to vector<1x128xf32>
    %34 = vector.shape_cast %11 : vector<1x128xf32> to vector<1x1x128xf32>
    tpu.vector_store %arg9[%c0_20, %c0_21, %c0_22], %34 {strides = array<i32>} : memref<1x1x128xf32, #tpu.memory_space<vmem>>, vector<1x1x128xf32>,
    %c0_23 = arith.constant 0 : index
    %c0_24 = arith.constant 0 : index
    %c0_25 = arith.constant 0 : index
    %35 = vector.load %arg5[%c0_23, %c0_24, %c0_25] : memref<1x8x128xf32, #tpu.memory_space<vmem>>, vector<1x8x128xf32>
    %36 = vector.shape_cast %35 : vector<1x8x128xf32> to vector<8x128xf32>
    %cst_26 = arith.constant dense<0xFF800000> : vector<128xf32>
    %37 = vector.multi_reduction <maximumf>, %36, %cst_26 [0] : vector<8x128xf32> to vector<128xf32>
    %38 = vector.shape_cast %37 : vector<128xf32> to vector<1x128xf32>
    %39 = vector.broadcast %38 : vector<1x128xf32> to vector<8x128xf32>
    %40 = arith.subf %36, %39 : vector<8x128xf32>
    %41 = math.exp %40 : vector<8x128xf32>
    %cst_27 = arith.constant dense<0.000000e+00> : vector<128xf32>
    %42 = vector.multi_reduction <add>, %41, %cst_27 [0] : vector<8x128xf32> to vector<128xf32>
    %43 = vector.shape_cast %42 : vector<128xf32> to vector<1x128xf32>
    %44 = math.log %43 : vector<1x128xf32>
    %45 = arith.addf %44, %38 : vector<1x128xf32>
    %46 = tpu.iota {dimensions = array<i32: 0>} : vector<8x128xi32>
    %47 = vector.broadcast %3 : vector<1x128xi32> to vector<8x128xi32>
    %48 = arith.cmpi eq, %46, %47 : vector<8x128xi32>
    %cst_28 = arith.constant 0.000000e+00 : f32
    %49 = vector.broadcast %cst_28 : f32 to vector<8x128xf32>
    %50 = arith.select %48, %36, %49 : vector<8x128xi1>, vector<8x128xf32>
    %cst_29 = arith.constant dense<0.000000e+00> : vector<128xf32>
    %51 = vector.multi_reduction <add>, %50, %cst_29 [0] : vector<8x128xf32> to vector<128xf32>
    %52 = vector.shape_cast %51 : vector<128xf32> to vector<1x128xf32>
    %53 = arith.subf %45, %52 : vector<1x128xf32>
    %c0_30 = arith.constant 0 : index
    %c0_31 = arith.constant 0 : index
    %c0_32 = arith.constant 0 : index
    %54 = vector.load %arg8[%c0_30, %c0_31, %c0_32] : memref<1x1x128xf32, #tpu.memory_space<vmem>>, vector<1x1x128xf32>
    %55 = vector.shape_cast %54 : vector<1x1x128xf32> to vector<1x128xf32>
    %56 = vector.shape_cast %53 : vector<1x128xf32> to vector<1x1x128xf32>
    tpu.vector_store %arg8[%c0_30, %c0_31, %c0_32], %56 {strides = array<i32>} : memref<1x1x128xf32, #tpu.memory_space<vmem>>, vector<1x1x128xf32>,
    %cst_33 = arith.constant 5.000000e-01 : f32
    %57 = vector.broadcast %cst_33 : f32 to vector<1x128xf32>
    %58 = arith.cmpf ogt, %1, %57 : vector<1x128xf32>
    %cst_34 = arith.constant 0.000000e+00 : f32
    %59 = vector.broadcast %cst_34 : f32 to vector<1x128xf32>
    %60 = arith.select %8, %59, %53 : vector<1x128xi1>, vector<1x128xf32>
    %cst_35 = arith.constant -1.000000e+30 : f32
    %61 = vector.broadcast %cst_35 : f32 to vector<1x128xf32>
    %62 = arith.select %58, %60, %61 : vector<1x128xi1>, vector<1x128xf32>
    %c0_36 = arith.constant 0 : index
    %c0_37 = arith.constant 0 : index
    %c0_38 = arith.constant 0 : index
    %63 = vector.load %arg7[%c0_36, %c0_37, %c0_38] : memref<1x1x128xf32, #tpu.memory_space<vmem>>, vector<1x1x128xf32>
    %64 = vector.shape_cast %63 : vector<1x1x128xf32> to vector<1x128xf32>
    %65 = vector.shape_cast %62 : vector<1x128xf32> to vector<1x1x128xf32>
    tpu.vector_store %arg7[%c0_36, %c0_37, %c0_38], %65 {strides = array<i32>} : memref<1x1x128xf32, #tpu.memory_space<vmem>>, vector<1x1x128xf32>,
    return
  }
  func.func @transform_0(%arg0: i32, %arg1: i32) -> (i32, i32, i32) {
    %c0_i32 = arith.constant 0 : i32
    %c0_i32_0 = arith.constant 0 : i32
    %c0_i32_1 = arith.constant 0 : i32
    return %c0_i32, %c0_i32_0, %arg1 : i32, i32, i32
  }
  func.func @transform_1(%arg0: i32, %arg1: i32) -> (i32, i32, i32) {
    %c0_i32 = arith.constant 0 : i32
    %c0_i32_0 = arith.constant 0 : i32
    return %arg0, %c0_i32, %arg1 : i32, i32, i32
  }
  func.func @transform_2(%arg0: i32, %arg1: i32) -> (i32, i32, i32) {
    %c0_i32 = arith.constant 0 : i32
    %c0_i32_0 = arith.constant 0 : i32
    return %arg0, %c0_i32, %arg1 : i32, i32, i32
  }
  func.func @transform_3(%arg0: i32, %arg1: i32) -> (i32, i32, i32) {
    %c0_i32 = arith.constant 0 : i32
    %c0_i32_0 = arith.constant 0 : i32
    return %arg0, %c0_i32, %arg1 : i32, i32, i32
  }
  func.func @transform_4(%arg0: i32, %arg1: i32) -> (i32, i32, i32) {
    %c0_i32 = arith.constant 0 : i32
    %c0_i32_0 = arith.constant 0 : i32
    return %arg0, %c0_i32, %arg1 : i32, i32, i32
  }
  func.func @transform_5(%arg0: i32, %arg1: i32) -> (i32, i32, i32) {
    %c0_i32 = arith.constant 0 : i32
    %c0_i32_0 = arith.constant 0 : i32
    return %arg0, %c0_i32, %arg1 : i32, i32, i32
  }
  func.func @transform_6(%arg0: i32, %arg1: i32) -> (i32, i32, i32) {
    %c0_i32 = arith.constant 0 : i32
    %c0_i32_0 = arith.constant 0 : i32
    return %arg0, %c0_i32, %arg1 : i32, i32, i32
  }
  func.func @transform_7(%arg0: i32, %arg1: i32) -> (i32, i32, i32) {
    %c0_i32 = arith.constant 0 : i32
    %c0_i32_0 = arith.constant 0 : i32
    return %arg0, %c0_i32, %arg1 : i32, i32, i32
  }
  func.func @transform_8(%arg0: i32, %arg1: i32) -> (i32, i32, i32) {
    %c0_i32 = arith.constant 0 : i32
    %c0_i32_0 = arith.constant 0 : i32
    return %arg0, %c0_i32, %arg1 : i32, i32, i32
  }
}

</mosaic_0001>

<llo_original>
// kernel: tpu_custom_call.1
$region0: #{tpu_custom_call.1}
  #allocation0 [shape = 'u32[]', space=smem, size = 0x4, offset = 0x4, fixed_abs, tag = 'smem constant byte address 0x4 - core index']
  #allocation1 [shape = 'u32[144,128]{1,0:T(1,128)}', space=vmem, size = 0x12000, scoped, tag = 'internal scratch']
  %s0 = inlined_call_operand.hbm [shape: f32[1,1,128], index: 0, kind: input, shape index: {}]
  %s1 = inlined_call_operand.hbm [shape: f32[2,4,128], index: 1, kind: input, shape index: {}]
  %s2 = inlined_call_operand.hbm [shape: f32[2,4,128], index: 2, kind: input, shape index: {}]
  %s3 = inlined_call_operand.hbm [shape: f32[2,8,128], index: 3, kind: input, shape index: {}]
  %s4 = inlined_call_operand.vmem [shape: s32[2,1,128], index: 4, kind: input, shape index: {}]
  %s5 = inlined_call_operand.hbm [shape: f32[2,1,128], index: 5, kind: output, shape index: {0}]
  %s6 = inlined_call_operand.hbm [shape: f32[2,1,128], index: 6, kind: output, shape index: {1}]
  %s7 = inlined_call_operand.hbm [shape: f32[2,1,128], index: 7, kind: output, shape index: {2}]
  %s8 = inlined_call_operand.hbm [shape: f32[2,1,128], index: 8, kind: output, shape index: {3}]
  %9 = xla_tuple %s5, %s6, %s7, %s8
  %s10 = sld [smem:[#allocation0]]
  $region93: #{tpu_custom_call.1} parent=0
    _
  %s12 = ssub.s32 1, %s10
  %s13 = scalar_select 0, %s12, %s10
  $region1: #{tpu_custom_call.1} parent=0
    #allocation2 [shape = 'u8[512]{0}', space=vmem, size = 0x400, scoped, tag = 'input window, operand 0, single buffered']
    #allocation3 [shape = 's32[2]{0}', space=sflag, size = 0x8, scoped, tag = 'scoped memory for tpu_custom_call.1']
    #allocation4 [shape = 's32[2]{0}', space=sflag, size = 0x8, scoped, tag = 'scoped memory for tpu_custom_call.1']
    #allocation5 [shape = 'u8[4096]{0}', space=vmem, size = 0x1000, scoped, tag = 'input window, operand 1']
    #allocation6 [shape = 's32[2]{0}', space=sflag, size = 0x8, scoped, tag = 'scoped memory for tpu_custom_call.1']
    #allocation7 [shape = 'u8[4096]{0}', space=vmem, size = 0x1000, scoped, tag = 'input window, operand 2']
    #allocation8 [shape = 'u8[8192]{0}', space=vmem, size = 0x2000, scoped, tag = 'input window, operand 3']
    #allocation9 [shape = 's32[2]{0}', space=sflag, size = 0x8, scoped, tag = 'scoped memory for tpu_custom_call.1']
    #allocation10 [shape = 'u8[1024]{0}', space=vmem, size = 0x400, scoped, tag = 'output window, operand 0']
    #allocation11 [shape = 'u8[1024]{0}', space=vmem, size = 0x400, scoped, tag = 'output window, operand 1']
    #allocation12 [shape = 's32[2]{0}', space=sflag, size = 0x8, scoped, tag = 'scoped memory for tpu_custom_call.1']
    #allocation13 [shape = 'u8[1024]{0}', space=vmem, size = 0x400, scoped, tag = 'output window, operand 2']
    #allocation14 [shape = 'u8[1024]{0}', space=vmem, size = 0x400, scoped, tag = 'output window, operand 3']
    #allocation15 [shape = 's32[2]{0}', space=sflag, size = 0x8, scoped, tag = 'scoped memory for tpu_custom_call.1']
    %14 = vsyncpa [#allocation3], 0
    %15 = vsyncpa [#allocation6], 0
    %s16 = scalar_lea.sflag [#allocation6], 1
    %17 = vsyncpa %s16, 0
    %18 = vsyncpa [#allocation9], 0
    %s19 = scalar_lea.sflag [#allocation9], 1
    %20 = vsyncpa %s19, 0
    %21 = vsyncpa [#allocation4], 0
    %s22 = scalar_lea.sflag [#allocation4], 1
    %23 = vsyncpa %s22, 0
    %24 = vsyncpa [#allocation12], 0
    %s25 = scalar_lea.sflag [#allocation12], 1
    %26 = vsyncpa %s25, 0
    %27 = vsyncpa [#allocation15], 0
    %s28 = scalar_lea.sflag [#allocation15], 1
    %29 = vsyncpa %s28, 0
    loop: start=0, step=1, limit=4
    $region2: #{tpu_custom_call.1} parent=1 // loop_pre_header
      _
    $region3: #{tpu_custom_call.1} parent=1 // loop_header
      %s31 = sphi 0, %s35
      %p32 = scmp.ge.s32.totalorder %s31, 4
      %s38 = sphi 0, %s50
      %s39 = sphi 0, %s46
      %s40 = sphi 0, %s38
      %s41 = sphi 0, %s39
      %s42 = sphi 0, %s40
      %s43 = sphi 0, %s41
      %s53 = sphi 0, %s55
      %s56 = sphi 0, %s53
      %s57 = sphi 0, %s56
      %s73 = sphi 0, %s57
      %s81 = sphi 0, %s83
      %s84 = sphi 0, %s81
      %s85 = sphi 0, %s84
      %s101 = sphi 0, %s85
      %s109 = sphi 0, %s111
      %s112 = sphi 0, %s109
      %s113 = sphi 0, %s112
      %s129 = sphi 0, %s113
      %s137 = sphi 0, %s139
      %s140 = sphi 0, %s137
      %s141 = sphi 0, %s140
      %s157 = sphi 0, %s141
      %s165 = sphi 0, %s167
      %s168 = sphi 0, %s165
      %s169 = sphi 0, %s168
      %s185 = sphi 0, %s169
      %s193 = sphi 0, %s195
      %s196 = sphi 0, %s193
      %s197 = sphi 0, %s196
      %s213 = sphi 0, %s197
      %s221 = sphi 0, %s223
      %s224 = sphi 0, %s221
      %s225 = sphi 0, %s224
      %s241 = sphi 0, %s225
      %s249 = sphi 0, %s251
      %s252 = sphi 0, %s249
      %s253 = sphi 0, %s252
      %s269 = sphi 0, %s253
      %s277 = sphi 0, %s279
      %s280 = sphi 0, %s277
      %s281 = sphi 0, %s280
      %s297 = sphi 0, %s281
    $region4: #{tpu_custom_call.1} parent=1 // loop_header_branch
      %34 = sbr.rel (%p32) target = $region8
    $region5: #{tpu_custom_call.1} parent=1 // loop_body
      %s36 = ssub.s32 %s31, 1
      %s37 = ssub.s32 %s31, 2
      %s44 = sadd.s32 1, %s39
      %p45 = scmp.ge.s32.totalorder %s44, 1
      %s46 = scalar_select %p45, 0, %s44
      %s47 = sadd.s32 1, %s38
      %s48 = scalar_select %p45, %s47, %s38
      %p49 = scmp.ge.s32.totalorder %s48, 2
      %s50 = scalar_select %p49, 0, %s48
      %s51 = ssub.s32 %s39, %s46
      %p52 = scmp.eq.s32.totalorder %s51, 0
      %s54 = sadd.s32 %s53, 1
      %s55 = scalar_select %p52, %s53, %s54
      %p58 = pneg %p52
      %p59 = scmp.eq.s32.totalorder %s31, 1
      %p60 = por %p58, %p59
      %p61 = scmp.ne.s32.totalorder %s53, %s56
      %p62 = scmp.eq.s32.totalorder %s31, 0
      %p63 = por %p61, %p62
      %p64 = scmp.ne.s32.totalorder %s53, %s56
      %p65 = scmp.eq.s32.totalorder %s36, 1
      %p66 = por %p64, %p65
      %p67 = scmp.ne.s32.totalorder %s56, %s57
      %p68 = scmp.eq.s32.totalorder %s36, 0
      %p69 = por %p67, %p68
      %p70 = scmp.ne.s32.totalorder %s56, %s57
      %p71 = scmp.eq.s32.totalorder %s37, 1
      %p72 = por %p70, %p71
      %p74 = scmp.ne.s32.totalorder %s57, %s73
      %p75 = scmp.eq.s32.totalorder %s37, 0
      %p76 = por %p74, %p75
      %s77 = ssub.s32 %s38, %s50
      %s78 = ssub.s32 %s39, %s46
      %s79 = sor.u32 %s77, %s78
      %p80 = scmp.eq.s32.totalorder %s79, 0
      %s82 = sadd.s32 %s81, 1
      %s83 = scalar_select %p80, %s81, %s82
      %p86 = pneg %p80
      %p87 = scmp.eq.s32.totalorder %s31, 1
      %p88 = por %p86, %p87
      %p89 = scmp.ne.s32.totalorder %s81, %s84
      %p90 = scmp.eq.s32.totalorder %s31, 0
      %p91 = por %p89, %p90
      %p92 = scmp.ne.s32.totalorder %s81, %s84
      %p93 = scmp.eq.s32.totalorder %s36, 1
      %p94 = por %p92, %p93
      %p95 = scmp.ne.s32.totalorder %s84, %s85
      %p96 = scmp.eq.s32.totalorder %s36, 0
      %p97 = por %p95, %p96
      %p98 = scmp.ne.s32.totalorder %s84, %s85
      %p99 = scmp.eq.s32.totalorder %s37, 1
      %p100 = por %p98, %p99
      %p102 = scmp.ne.s32.totalorder %s85, %s101
      %p103 = scmp.eq.s32.totalorder %s37, 0
      %p104 = por %p102, %p103
      %s105 = ssub.s32 %s38, %s50
      %s106 = ssub.s32 %s39, %s46
      %s107 = sor.u32 %s105, %s106
      %p108 = scmp.eq.s32.totalorder %s107, 0
      %s110 = sadd.s32 %s109, 1
      %s111 = scalar_select %p108, %s109, %s110
      %p114 = pneg %p108
      %p115 = scmp.eq.s32.totalorder %s31, 1
      %p116 = por %p114, %p115
      %p117 = scmp.ne.s32.totalorder %s109, %s112
      %p118 = scmp.eq.s32.totalorder %s31, 0
      %p119 = por %p117, %p118
      %p120 = scmp.ne.s32.totalorder %s109, %s112
      %p121 = scmp.eq.s32.totalorder %s36, 1
      %p122 = por %p120, %p121
      %p123 = scmp.ne.s32.totalorder %s112, %s113
      %p124 = scmp.eq.s32.totalorder %s36, 0
      %p125 = por %p123, %p124
      %p126 = scmp.ne.s32.totalorder %s112, %s113
      %p127 = scmp.eq.s32.totalorder %s37, 1
      %p128 = por %p126, %p127
      %p130 = scmp.ne.s32.totalorder %s113, %s129
      %p131 = scmp.eq.s32.totalorder %s37, 0
      %p132 = por %p130, %p131
      %s133 = ssub.s32 %s38, %s50
      %s134 = ssub.s32 %s39, %s46
      %s135 = sor.u32 %s133, %s134
      %p136 = scmp.eq.s32.totalorder %s135, 0
      %s138 = sadd.s32 %s137, 1
      %s139 = scalar_select %p136, %s137, %s138
      %p142 = pneg %p136
      %p143 = scmp.eq.s32.totalorder %s31, 1
      %p144 = por %p142, %p143
      %p145 = scmp.ne.s32.totalorder %s137, %s140
      %p146 = scmp.eq.s32.totalorder %s31, 0
      %p147 = por %p145, %p146
      %p148 = scmp.ne.s32.totalorder %s137, %s140
      %p149 = scmp.eq.s32.totalorder %s36, 1
      %p150 = por %p148, %p149
      %p151 = scmp.ne.s32.totalorder %s140, %s141
      %p152 = scmp.eq.s32.totalorder %s36, 0
      %p153 = por %p151, %p152
      %p154 = scmp.ne.s32.totalorder %s140, %s141
      %p155 = scmp.eq.s32.totalorder %s37, 1
      %p156 = por %p154, %p155
      %p158 = scmp.ne.s32.totalorder %s141, %s157
      %p159 = scmp.eq.s32.totalorder %s37, 0
      %p160 = por %p158, %p159
      %s161 = ssub.s32 %s38, %s50
      %s162 = ssub.s32 %s39, %s46
      %s163 = sor.u32 %s161, %s162
      %p164 = scmp.eq.s32.totalorder %s163, 0
      %s166 = sadd.s32 %s165, 1
      %s167 = scalar_select %p164, %s165, %s166
      %p170 = pneg %p164
      %p171 = scmp.eq.s32.totalorder %s31, 1
      %p172 = por %p170, %p171
      %p173 = scmp.ne.s32.totalorder %s165, %s168
      %p174 = scmp.eq.s32.totalorder %s31, 0
      %p175 = por %p173, %p174
      %p176 = scmp.ne.s32.totalorder %s165, %s168
      %p177 = scmp.eq.s32.totalorder %s36, 1
      %p178 = por %p176, %p177
      %p179 = scmp.ne.s32.totalorder %s168, %s169
      %p180 = scmp.eq.s32.totalorder %s36, 0
      %p181 = por %p179, %p180
      %p182 = scmp.ne.s32.totalorder %s168, %s169
      %p183 = scmp.eq.s32.totalorder %s37, 1
      %p184 = por %p182, %p183
      %p186 = scmp.ne.s32.totalorder %s169, %s185
      %p187 = scmp.eq.s32.totalorder %s37, 0
      %p188 = por %p186, %p187
      %s189 = ssub.s32 %s38, %s50
      %s190 = ssub.s32 %s39, %s46
      %s191 = sor.u32 %s189, %s190
      %p192 = scmp.eq.s32.totalorder %s191, 0
      %s194 = sadd.s32 %s193, 1
      %s195 = scalar_select %p192, %s193, %s194
      %p198 = pneg %p192
      %p199 = scmp.eq.s32.totalorder %s31, 1
      %p200 = por %p198, %p199
      %p201 = scmp.ne.s32.totalorder %s193, %s196
      %p202 = scmp.eq.s32.totalorder %s31, 0
      %p203 = por %p201, %p202
      %p204 = scmp.ne.s32.totalorder %s193, %s196
      %p205 = scmp.eq.s32.totalorder %s36, 1
      %p206 = por %p204, %p205
      %p207 = scmp.ne.s32.totalorder %s196, %s197
      %p208 = scmp.eq.s32.totalorder %s36, 0
      %p209 = por %p207, %p208
      %p210 = scmp.ne.s32.totalorder %s196, %s197
      %p211 = scmp.eq.s32.totalorder %s37, 1
      %p212 = por %p210, %p211
      %p214 = scmp.ne.s32.totalorder %s197, %s213
      %p215 = scmp.eq.s32.totalorder %s37, 0
      %p216 = por %p214, %p215
      %s217 = ssub.s32 %s38, %s50
      %s218 = ssub.s32 %s39, %s46
      %s219 = sor.u32 %s217, %s218
      %p220 = scmp.eq.s32.totalorder %s219, 0
      %s222 = sadd.s32 %s221, 1
      %s223 = scalar_select %p220, %s221, %s222
      %p226 = pneg %p220
      %p227 = scmp.eq.s32.totalorder %s31, 1
      %p228 = por %p226, %p227
      %p229 = scmp.ne.s32.totalorder %s221, %s224
      %p230 = scmp.eq.s32.totalorder %s31, 0
      %p231 = por %p229, %p230
      %p232 = scmp.ne.s32.totalorder %s221, %s224
      %p233 = scmp.eq.s32.totalorder %s36, 1
      %p234 = por %p232, %p233
      %p235 = scmp.ne.s32.totalorder %s224, %s225
      %p236 = scmp.eq.s32.totalorder %s36, 0
      %p237 = por %p235, %p236
      %p238 = scmp.ne.s32.totalorder %s224, %s225
      %p239 = scmp.eq.s32.totalorder %s37, 1
      %p240 = por %p238, %p239
      %p242 = scmp.ne.s32.totalorder %s225, %s241
      %p243 = scmp.eq.s32.totalorder %s37, 0
      %p244 = por %p242, %p243
      %s245 = ssub.s32 %s38, %s50
      %s246 = ssub.s32 %s39, %s46
      %s247 = sor.u32 %s245, %s246
      %p248 = scmp.eq.s32.totalorder %s247, 0
      %s250 = sadd.s32 %s249, 1
      %s251 = scalar_select %p248, %s249, %s250
      %p254 = pneg %p248
      %p255 = scmp.eq.s32.totalorder %s31, 1
      %p256 = por %p254, %p255
      %p257 = scmp.ne.s32.totalorder %s249, %s252
      %p258 = scmp.eq.s32.totalorder %s31, 0
      %p259 = por %p257, %p258
      %p260 = scmp.ne.s32.totalorder %s249, %s252
      %p261 = scmp.eq.s32.totalorder %s36, 1
      %p262 = por %p260, %p261
      %p263 = scmp.ne.s32.totalorder %s252, %s253
      %p264 = scmp.eq.s32.totalorder %s36, 0
      %p265 = por %p263, %p264
      %p266 = scmp.ne.s32.totalorder %s252, %s253
      %p267 = scmp.eq.s32.totalorder %s37, 1
      %p268 = por %p266, %p267
      %p270 = scmp.ne.s32.totalorder %s253, %s269
      %p271 = scmp.eq.s32.totalorder %s37, 0
      %p272 = por %p270, %p271
      %s273 = ssub.s32 %s38, %s50
      %s274 = ssub.s32 %s39, %s46
      %s275 = sor.u32 %s273, %s274
      %p276 = scmp.eq.s32.totalorder %s275, 0
      %s278 = sadd.s32 %s277, 1
      %s279 = scalar_select %p276, %s277, %s278
      %p282 = pneg %p276
      %p283 = scmp.eq.s32.totalorder %s31, 1
      %p284 = por %p282, %p283
      %p285 = scmp.ne.s32.totalorder %s277, %s280
      %p286 = scmp.eq.s32.totalorder %s31, 0
      %p287 = por %p285, %p286
      %p288 = scmp.ne.s32.totalorder %s277, %s280
      %p289 = scmp.eq.s32.totalorder %s36, 1
      %p290 = por %p288, %p289
      %p291 = scmp.ne.s32.totalorder %s280, %s281
      %p292 = scmp.eq.s32.totalorder %s36, 0
      %p293 = por %p291, %p292
      %p294 = scmp.ne.s32.totalorder %s280, %s281
      %p295 = scmp.eq.s32.totalorder %s37, 1
      %p296 = por %p294, %p295
      %p298 = scmp.ne.s32.totalorder %s281, %s297
      %p299 = scmp.eq.s32.totalorder %s37, 0
      %p300 = por %p298, %p299
      %p301 = scmp.le.s32.totalorder 1, %s31
      %p302 = scmp.lt.s32.totalorder %s31, 3
      %p303 = pnand %p301, %p302
      %p304 = pneg %p303
      // Predicated region
      $region9: #{tpu_custom_call.1} parent=5 // pred_check
        _
      $region10: #{tpu_custom_call.1} parent=5 // pred_check_branch
        %306 = sbr.rel (%p303) target = $region12
      $region11: #{tpu_custom_call.1} parent=5 // pred_region
        %s307 = ssub.s32 %s31, 1
        // Predicated region
        $region13: #{tpu_custom_call.1} parent=11 // pred_check
          %p308 = pneg %p69
        $region14: #{tpu_custom_call.1} parent=11 // pred_check_branch
          %310 = sbr.rel (%p308) target = $region16
        $region15: #{tpu_custom_call.1} parent=11 // pred_region
          %s312 = ssub.s32 16, 16
          %313 = vsyncadd [#allocation3], %s312
          %s314 = smul.addr %s41, 16
          %s315 = scalar_lea.hbm %s0, %s314
          %s317 = sshll.u32 [#allocation2], 4
          %s318 = int_to_ptr.vmem [resolvable:$true] %s317
          %320 = dma.hbm_to_vmem [thread:$0]  %s315, 16, %s318, [#allocation3]
        $region16: #{tpu_custom_call.1} parent=11 // pred_fallthru
          _
      $region12: #{tpu_custom_call.1} parent=5 // pred_fallthru
        _
      %p321 = scmp.lt.s32.totalorder %s31, 2
      // Predicated region
      $region17: #{tpu_custom_call.1} parent=5 // pred_check
        %p322 = pneg %p321
      $region18: #{tpu_custom_call.1} parent=5 // pred_check_branch
        %324 = sbr.rel (%p322) target = $region20
      $region19: #{tpu_custom_call.1} parent=5 // pred_region
        // Predicated region
        $region21: #{tpu_custom_call.1} parent=19 // pred_check
          %p325 = pneg %p91
        $region22: #{tpu_custom_call.1} parent=19 // pred_check_branch
          %327 = sbr.rel (%p325) target = $region24
        $region23: #{tpu_custom_call.1} parent=19 // pred_region
          %s328 = sand.u32 %s31, 1
          %s329 = scalar_lea.sflag [#allocation6], %s328
          %s330 = sand.u32 %s81, 1
          %s331 = smul.addr %s330, 4
          %s332 = scalar_lea.vmem [#allocation5], %s331
          %s334 = ssub.s32 64, 64
          %335 = vsyncadd %s329, %s334
          %s336 = sadd.s32 %s39, %s38
          %s337 = smul.addr %s336, 64
          %s338 = scalar_lea.hbm %s1, %s337
          %s340 = sshll.u32 %s332, 4
          %s341 = int_to_ptr.vmem [resolvable:$true] %s340
          %343 = dma.hbm_to_vmem [thread:$0]  %s338, 64, %s341, %s329
        $region24: #{tpu_custom_call.1} parent=19 // pred_fallthru
          _
        // Predicated region
        $region25: #{tpu_custom_call.1} parent=19 // pred_check
          %p344 = pneg %p119
        $region26: #{tpu_custom_call.1} parent=19 // pred_check_branch
          %346 = sbr.rel (%p344) target = $region28
        $region27: #{tpu_custom_call.1} parent=19 // pred_region
          %s347 = sand.u32 %s31, 1
          %s348 = scalar_lea.sflag [#allocation6], %s347
          %s349 = sand.u32 %s109, 1
          %s350 = smul.addr %s349, 4
          %s351 = scalar_lea.vmem [#allocation7], %s350
          %s353 = ssub.s32 64, 64
          %354 = vsyncadd %s348, %s353
          %s355 = sadd.s32 %s39, %s38
          %s356 = smul.addr %s355, 64
          %s357 = scalar_lea.hbm %s2, %s356
          %s359 = sshll.u32 %s351, 4
          %s360 = int_to_ptr.vmem [resolvable:$true] %s359
          %362 = dma.hbm_to_vmem [thread:$0]  %s357, 64, %s360, %s348
        $region28: #{tpu_custom_call.1} parent=19 // pred_fallthru
          _
        // Predicated region
        $region29: #{tpu_custom_call.1} parent=19 // pred_check
          %p363 = pneg %p147
        $region30: #{tpu_custom_call.1} parent=19 // pred_check_branch
          %365 = sbr.rel (%p363) target = $region32
        $region31: #{tpu_custom_call.1} parent=19 // pred_region
          %s366 = sand.u32 %s137, 1
          %s367 = scalar_lea.sflag [#allocation9], %s366
          %s368 = sand.u32 %s137, 1
          %s369 = smul.addr %s368, 8
          %s370 = scalar_lea.vmem [#allocation8], %s369
          %s372 = ssub.s32 128, 128
          %373 = vsyncadd %s367, %s372
          %s374 = sadd.s32 %s39, %s38
          %s375 = smul.addr %s374, 128
          %s376 = scalar_lea.hbm %s3, %s375
          %s378 = sshll.u32 %s370, 4
          %s379 = int_to_ptr.vmem [resolvable:$true] %s378
          %381 = dma.hbm_to_vmem [thread:$0]  %s376, 128, %s379, %s367
        $region32: #{tpu_custom_call.1} parent=19 // pred_fallthru
          _
        // Predicated region
        $region33: #{tpu_custom_call.1} parent=19 // pred_check
          %p382 = pneg %p175
        $region34: #{tpu_custom_call.1} parent=19 // pred_check_branch
          %384 = sbr.rel (%p382) target = $region36
        $region35: #{tpu_custom_call.1} parent=19 // pred_region
          %p385 = scmp.lt.s32.totalorder %s38, 1
          %s386 = scalar_select %p385, %s38, 1
          %p387 = scmp.lt.s32.totalorder %s39, 0
          %s388 = scalar_select %p387, %s39, 0
          %s389 = sadd.s32 %s388, %s386
          %s390 = scalar_lea.vmem %s4, %s389
        $region36: #{tpu_custom_call.1} parent=19 // pred_fallthru
          _
      $region20: #{tpu_custom_call.1} parent=5 // pred_fallthru
        _
      %p391 = scmp.le.s32.totalorder 1, %s31
      %p392 = scmp.lt.s32.totalorder %s31, 3
      %p393 = pnand %p391, %p392
      %p394 = pneg %p393
      // Predicated region
      $region37: #{tpu_custom_call.1} parent=5 // pred_check
        _
      $region38: #{tpu_custom_call.1} parent=5 // pred_check_branch
        %396 = sbr.rel (%p393) target = $region40
      $region39: #{tpu_custom_call.1} parent=5 // pred_region
        %s397 = ssub.s32 %s31, 1
        // Predicated region
        $region41: #{tpu_custom_call.1} parent=39 // pred_check
          %p398 = pneg %p69
        $region42: #{tpu_custom_call.1} parent=39 // pred_check_branch
          %400 = sbr.rel (%p398) target = $region44
        $region43: #{tpu_custom_call.1} parent=39 // pred_region
          %401 = dma.done [#allocation3], 16
        $region44: #{tpu_custom_call.1} parent=39 // pred_fallthru
          _
        %s402 = sand.u32 %s36, 1
        %s403 = scalar_lea.sflag [#allocation6], %s402
        %s404 = sand.u32 %s84, 1
        %s405 = smul.addr %s404, 4
        %s406 = scalar_lea.vmem [#allocation5], %s405
        // Predicated region
        $region45: #{tpu_custom_call.1} parent=39 // pred_check
          %p407 = pneg %p97
        $region46: #{tpu_custom_call.1} parent=39 // pred_check_branch
          %409 = sbr.rel (%p407) target = $region48
        $region47: #{tpu_custom_call.1} parent=39 // pred_region
          %410 = dma.done %s403, 64
        $region48: #{tpu_custom_call.1} parent=39 // pred_fallthru
          _
        %s411 = sand.u32 %s36, 1
        %s412 = scalar_lea.sflag [#allocation6], %s411
        %s413 = sand.u32 %s112, 1
        %s414 = smul.addr %s413, 4
        %s415 = scalar_lea.vmem [#allocation7], %s414
        // Predicated region
        $region49: #{tpu_custom_call.1} parent=39 // pred_check
          %p416 = pneg %p125
        $region50: #{tpu_custom_call.1} parent=39 // pred_check_branch
          %418 = sbr.rel (%p416) target = $region52
        $region51: #{tpu_custom_call.1} parent=39 // pred_region
          %419 = dma.done %s412, 64
        $region52: #{tpu_custom_call.1} parent=39 // pred_fallthru
          _
        %s420 = sand.u32 %s140, 1
        %s421 = scalar_lea.sflag [#allocation9], %s420
        %s422 = sand.u32 %s140, 1
        %s423 = smul.addr %s422, 8
        %s424 = scalar_lea.vmem [#allocation8], %s423
        // Predicated region
        $region53: #{tpu_custom_call.1} parent=39 // pred_check
          %p425 = pneg %p153
        $region54: #{tpu_custom_call.1} parent=39 // pred_check_branch
          %427 = sbr.rel (%p425) target = $region56
        $region55: #{tpu_custom_call.1} parent=39 // pred_region
          %428 = dma.done %s421, 128
        $region56: #{tpu_custom_call.1} parent=39 // pred_fallthru
          _
        %p429 = pneg %p69
        %p430 = pneg %p66
        %s431 = sand.u32 %s36, 1
        %s432 = scalar_lea.sflag [#allocation6], %s431
        %s433 = sand.u32 %s84, 1
        %s434 = smul.addr %s433, 4
        %s435 = scalar_lea.vmem [#allocation5], %s434
        %p436 = pneg %p97
        %p437 = pneg %p94
        %s438 = sand.u32 %s36, 1
        %s439 = scalar_lea.sflag [#allocation6], %s438
        %s440 = sand.u32 %s112, 1
        %s441 = smul.addr %s440, 4
        %s442 = scalar_lea.vmem [#allocation7], %s441
        %p443 = pneg %p125
        %p444 = pneg %p122
        %s445 = sand.u32 %s140, 1
        %s446 = scalar_lea.sflag [#allocation9], %s445
        %s447 = sand.u32 %s140, 1
        %s448 = smul.addr %s447, 8
        %s449 = scalar_lea.vmem [#allocation8], %s448
        %p450 = pneg %p153
        %p451 = pneg %p150
        %p452 = scmp.lt.s32.totalorder %s40, 1
        %s453 = scalar_select %p452, %s40, 1
        %p454 = scmp.lt.s32.totalorder %s41, 0
        %s455 = scalar_select %p454, %s41, 0
        %s456 = sadd.s32 %s455, %s453
        %s457 = scalar_lea.vmem %s4, %s456
        %p458 = pneg %p181
        %p459 = pneg %p178
        %p460 = pneg %p209
        %p461 = pneg %p206
        %s462 = sand.u32 %s196, 1
        %s463 = scalar_lea.sflag [#allocation4], %s462
        %s464 = sand.u32 %s196, 1
        %s465 = scalar_lea.vmem [#allocation10], %s464
        %p466 = pneg %p237
        %p467 = pneg %p234
        %s468 = sand.u32 %s36, 1
        %s469 = scalar_lea.sflag [#allocation12], %s468
        %s470 = sand.u32 %s224, 1
        %s471 = scalar_lea.vmem [#allocation11], %s470
        %p472 = pneg %p265
        %p473 = pneg %p262
        %s474 = sand.u32 %s36, 1
        %s475 = scalar_lea.sflag [#allocation12], %s474
        %s476 = sand.u32 %s252, 1
        %s477 = scalar_lea.vmem [#allocation13], %s476
        %p478 = pneg %p293
        %p479 = pneg %p290
        %s480 = sand.u32 %s280, 1
        %s481 = scalar_lea.sflag [#allocation15], %s480
        %s482 = sand.u32 %s280, 1
        %s483 = scalar_lea.vmem [#allocation14], %s482
        %p484 = scmp.lt.s32.totalorder %s40, 1
        %s485 = scalar_select %p484, %s40, 1
        %p486 = scmp.lt.s32.totalorder %s41, 0
        %s487 = scalar_select %p486, %s41, 0
        %s488 = sadd.s32 %s487, %s485
        %s489 = scalar_lea.vmem %s4, %s488
        %v490 = vld [vmem:[#allocation2] sm:$0x1]
        %v491 = vld [vmem:[%s489] sm:$0x1]
        %vm492 = vcmp.gt.s32.totalorder %v491, 0
        %vm493 = vcmp.gt.f32.partialorder %v490, 0.5
        %vm494 = vmand %vm492, %vm493
        %v495 = vsel %vm494, 1.0, 0.0
        %v496 = vld [vmem:[%s406] sm:$0xf]
        %v497 = vld [vmem:[%s415] sm:$0xf]
        %v498 = vsub.f32 %v496, %v497
        %v499 = vand.u32 2147483647, %v498
        %vm500 = vcmp.lt.f32.partialorder %v499, 1.0
        %v501 = vmul.f32 %v498, 0.5
        %v502 = vmul.f32 %v501, %v498
        %v503 = vsub.f32 %v499, 0.5
        %v504 = vsel %vm500, %v502, %v503
        %vm505 = vcmask 1043456
        %v506 = vsel %vm505, %v504, 0.0
        %v507 = vrot.slane %v506, 4
        %v508 = vadd.f32 %v506, %v507
        %v509 = vrot.slane %v508, 2
        %v510 = vadd.f32 %v508, %v509
        %v511 = vrot.slane %v510, 1
        %v512 = vadd.f32 %v510, %v511
        %v513 = vmul.f32 %v495, %v512
        %514 = vst [vmem:[%s483] sm:$0x1] %v513
        %515 = vst [vmem:[%s477] sm:$0x1] %v495
        %v516 = vld [vmem:[%s424] sm:$0xff]
        %v517 = vrot.slane %v516, 4
        %v518 = vmax.f32 %v516, %v517
        %v519 = vrot.slane %v518, 2
        %v520 = vmax.f32 %v518, %v519
        %v521 = vrot.slane %v520, 1
        %v522 = vmax.f32 %v520, %v521
        %v523 = vsub.f32 %v516, %v522
        %v524 = vmul.f32 %v523, 1.442695
        %v525 = vpow.pop %v524
        %v526 = vrot.slane %v525, 4
        %v527 = vadd.f32 %v525, %v526
        %v528 = vrot.slane %v527, 2
        %v529 = vadd.f32 %v527, %v528
        %v530 = vrot.slane %v529, 1
        %v531 = vadd.f32 %v529, %v530
        %v532 = vlog2.pop %v531
        %v533 = vmul.f32 %v532, 0.6931472
        %v534 = vadd.f32 %v533, %v522
        %v535 = vlaneseq
        %v536 = vshrl.u32 %v535, 7
        %v537 = vlaneseq
        %v538 = vshrl.u32 %v537, 7
        %v539 = vsub.s32 0, %v538
        %v540 = vrot.slane %v491, %v539
        %vm541 = vcmp.eq.s32.totalorder %v536, %v540
        %v542 = vsel %vm541, %v516, 0.0
        %v543 = vrot.slane %v542, 4
        %v544 = vadd.f32 %v542, %v543
        %v545 = vrot.slane %v544, 2
        %v546 = vadd.f32 %v544, %v545
        %v547 = vrot.slane %v546, 1
        %v548 = vadd.f32 %v546, %v547
        %v549 = vsub.f32 %v534, %v548
        %550 = vst [vmem:[%s471] sm:$0x1] %v549
        %v551 = vsel %vm494, 0.0, %v549
        %v552 = vsel %vm493, %v551, -1e+30
        %553 = vst [vmem:[%s465] sm:$0x1] %v552
        %s554 = sand.u32 %s196, 1
        %s555 = scalar_lea.sflag [#allocation4], %s554
        %s556 = sand.u32 %s196, 1
        %s557 = scalar_lea.vmem [#allocation10], %s556
        %s558 = sand.u32 %s36, 1
        %s559 = scalar_lea.sflag [#allocation12], %s558
        %s560 = sand.u32 %s224, 1
        %s561 = scalar_lea.vmem [#allocation11], %s560
        %s562 = sand.u32 %s36, 1
        %s563 = scalar_lea.sflag [#allocation12], %s562
        %s564 = sand.u32 %s252, 1
        %s565 = scalar_lea.vmem [#allocation13], %s564
        %s566 = sand.u32 %s280, 1
        %s567 = scalar_lea.sflag [#allocation15], %s566
        %s568 = sand.u32 %s280, 1
        %s569 = scalar_lea.vmem [#allocation14], %s568
        // Predicated region
        $region57: #{tpu_custom_call.1} parent=39 // pred_check
          %p570 = pneg %p206
        $region58: #{tpu_custom_call.1} parent=39 // pred_check_branch
          %572 = sbr.rel (%p570) target = $region60
        $region59: #{tpu_custom_call.1} parent=39 // pred_region
          %s574 = ssub.s32 16, 16
          %575 = vsyncadd %s555, %s574
          %s576 = sadd.s32 %s41, %s40
          %s577 = smul.addr %s576, 16
          %s578 = scalar_lea.hbm %s5, %s577
          %s580 = sshll.u32 %s557, 4
          %s581 = int_to_ptr.vmem [resolvable:$true] %s580
          %583 = dma.vmem_to_hbm [thread:$0]  %s581, 16, %s578, %s555
        $region60: #{tpu_custom_call.1} parent=39 // pred_fallthru
          _
        // Predicated region
        $region61: #{tpu_custom_call.1} parent=39 // pred_check
          %p584 = pneg %p234
        $region62: #{tpu_custom_call.1} parent=39 // pred_check_branch
          %586 = sbr.rel (%p584) target = $region64
        $region63: #{tpu_custom_call.1} parent=39 // pred_region
          %s588 = ssub.s32 16, 16
          %589 = vsyncadd %s559, %s588
          %s590 = sadd.s32 %s41, %s40
          %s591 = smul.addr %s590, 16
          %s592 = scalar_lea.hbm %s6, %s591
          %s594 = sshll.u32 %s561, 4
          %s595 = int_to_ptr.vmem [resolvable:$true] %s594
          %597 = dma.vmem_to_hbm [thread:$0]  %s595, 16, %s592, %s559
        $region64: #{tpu_custom_call.1} parent=39 // pred_fallthru
          _
        // Predicated region
        $region65: #{tpu_custom_call.1} parent=39 // pred_check
          %p598 = pneg %p262
        $region66: #{tpu_custom_call.1} parent=39 // pred_check_branch
          %600 = sbr.rel (%p598) target = $region68
        $region67: #{tpu_custom_call.1} parent=39 // pred_region
          %s602 = ssub.s32 16, 16
          %603 = vsyncadd %s563, %s602
          %s604 = sadd.s32 %s41, %s40
          %s605 = smul.addr %s604, 16
          %s606 = scalar_lea.hbm %s7, %s605
          %s608 = sshll.u32 %s565, 4
          %s609 = int_to_ptr.vmem [resolvable:$true] %s608
          %611 = dma.vmem_to_hbm [thread:$0]  %s609, 16, %s606, %s563
        $region68: #{tpu_custom_call.1} parent=39 // pred_fallthru
          _
        // Predicated region
        $region69: #{tpu_custom_call.1} parent=39 // pred_check
          %p612 = pneg %p290
        $region70: #{tpu_custom_call.1} parent=39 // pred_check_branch
          %614 = sbr.rel (%p612) target = $region72
        $region71: #{tpu_custom_call.1} parent=39 // pred_region
          %s616 = ssub.s32 16, 16
          %617 = vsyncadd %s567, %s616
          %s618 = sadd.s32 %s41, %s40
          %s619 = smul.addr %s618, 16
          %s620 = scalar_lea.hbm %s8, %s619
          %s622 = sshll.u32 %s569, 4
          %s623 = int_to_ptr.vmem [resolvable:$true] %s622
          %625 = dma.vmem_to_hbm [thread:$0]  %s623, 16, %s620, %s567
        $region72: #{tpu_custom_call.1} parent=39 // pred_fallthru
          _
      $region40: #{tpu_custom_call.1} parent=5 // pred_fallthru
        _
      %p626 = scmp.le.s32.totalorder 2, %s31
      // Predicated region
      $region73: #{tpu_custom_call.1} parent=5 // pred_check
        %p627 = pneg %p626
      $region74: #{tpu_custom_call.1} parent=5 // pred_check_branch
        %629 = sbr.rel (%p627) target = $region76
      $region75: #{tpu_custom_call.1} parent=5 // pred_region
        %s630 = ssub.s32 %s31, 2
        // Predicated region
        $region77: #{tpu_custom_call.1} parent=75 // pred_check
          %p631 = pneg %p212
        $region78: #{tpu_custom_call.1} parent=75 // pred_check_branch
          %633 = sbr.rel (%p631) target = $region80
        $region79: #{tpu_custom_call.1} parent=75 // pred_region
          %s634 = sand.u32 %s197, 1
          %s635 = scalar_lea.sflag [#allocation4], %s634
          %s636 = sand.u32 %s197, 1
          %s637 = scalar_lea.vmem [#allocation10], %s636
          %638 = dma.done %s635, 16
        $region80: #{tpu_custom_call.1} parent=75 // pred_fallthru
          _
        // Predicated region
        $region81: #{tpu_custom_call.1} parent=75 // pred_check
          %p639 = pneg %p240
        $region82: #{tpu_custom_call.1} parent=75 // pred_check_branch
          %641 = sbr.rel (%p639) target = $region84
        $region83: #{tpu_custom_call.1} parent=75 // pred_region
          %s642 = sand.u32 %s37, 1
          %s643 = scalar_lea.sflag [#allocation12], %s642
          %s644 = sand.u32 %s225, 1
          %s645 = scalar_lea.vmem [#allocation11], %s644
          %646 = dma.done %s643, 16
        $region84: #{tpu_custom_call.1} parent=75 // pred_fallthru
          _
        // Predicated region
        $region85: #{tpu_custom_call.1} parent=75 // pred_check
          %p647 = pneg %p268
        $region86: #{tpu_custom_call.1} parent=75 // pred_check_branch
          %649 = sbr.rel (%p647) target = $region88
        $region87: #{tpu_custom_call.1} parent=75 // pred_region
          %s650 = sand.u32 %s37, 1
          %s651 = scalar_lea.sflag [#allocation12], %s650
          %s652 = sand.u32 %s253, 1
          %s653 = scalar_lea.vmem [#allocation13], %s652
          %654 = dma.done %s651, 16
        $region88: #{tpu_custom_call.1} parent=75 // pred_fallthru
          _
        // Predicated region
        $region89: #{tpu_custom_call.1} parent=75 // pred_check
          %p655 = pneg %p296
        $region90: #{tpu_custom_call.1} parent=75 // pred_check_branch
          %657 = sbr.rel (%p655) target = $region92
        $region91: #{tpu_custom_call.1} parent=75 // pred_region
          %s658 = sand.u32 %s281, 1
          %s659 = scalar_lea.sflag [#allocation15], %s658
          %s660 = sand.u32 %s281, 1
          %s661 = scalar_lea.vmem [#allocation14], %s660
          %662 = dma.done %s659, 16
        $region92: #{tpu_custom_call.1} parent=75 // pred_fallthru
          _
      $region76: #{tpu_custom_call.1} parent=5 // pred_fallthru
        _
    $region6: #{tpu_custom_call.1} parent=1 // loop_footer
      %s35 = sadd.s32 1, %s31
    $region7: #{tpu_custom_call.1} parent=1 // loop_footer_branch
      %30 = sbr.rel target = $region3
    $region8: #{tpu_custom_call.1} parent=1 // loop_exit
      _
    %663 = vsyncpa [#allocation3], 1
    %s664 = scalar_lea.sflag [#allocation3], 1
    %665 = vsyncpa %s664, 1
    %666 = vsyncpa [#allocation6], 1
    %s667 = scalar_lea.sflag [#allocation6], 1
    %668 = vsyncpa %s667, 1
    %669 = vsyncpa [#allocation9], 1
    %s670 = scalar_lea.sflag [#allocation9], 1
    %671 = vsyncpa %s670, 1
    %672 = vsyncpa [#allocation4], 1
    %s673 = scalar_lea.sflag [#allocation4], 1
    %674 = vsyncpa %s673, 1
    %675 = vsyncpa [#allocation12], 1
    %s676 = scalar_lea.sflag [#allocation12], 1
    %677 = vsyncpa %s676, 1
    %678 = vsyncpa [#allocation15], 1
    %s679 = scalar_lea.sflag [#allocation15], 1
    %680 = vsyncpa %s679, 1

</llo_original>
